<compile_context>
chip_gen: v7x
topology: tpu7x:2x2x1
jax: 0.10.0
libtpu: 0.0.40
codegen_flags: <defaults>
</compile_context>

<pallas_src>
import functools

import jax
import jax.numpy as jnp
from jax.experimental import pallas as pl
from jax.experimental.pallas import tpu as pltpu


# ----------------------------- kernels ------------------------------------ #

def _excite(pooled_f32, w1t, w2t):
    """Bias-free Linear -> ReLU -> Linear -> Sigmoid on the pooled (bb, C) slab."""
    h = jnp.dot(pooled_f32, w1t, preferred_element_type=jnp.float32)   # (bb, hid)
    h = jnp.maximum(h, 0.0)
    y = jnp.dot(h, w2t, preferred_element_type=jnp.float32)            # (bb, C)
    return jax.nn.sigmoid(y)


def _se_kernel_lane_hw(x_ref, w1t_ref, w2t_ref, o_ref, *, inv_hw):
    # Block layout (bb, C, HW): lane axis = HW (multiple of 128).
    # Upcast happens inside the reduction; no full f32 block temporary.
    pooled = jnp.sum(x_ref[...], axis=-1, dtype=jnp.float32) * inv_hw  # (bb, C)
    y = _excite(pooled, w1t_ref[...], w2t_ref[...])                    # (bb, C)
    o_ref[...] = x_ref[...] * y.astype(o_ref.dtype)[:, :, None]


def _se_kernel_lane_c(x_ref, w1t_ref, w2t_ref, o_ref, *, inv_hw):
    # Block layout (bb, HW, C): lane axis = C (multiple of 128); pool over
    # the sublane (HW) axis and broadcast y back over it.
    pooled = jnp.sum(x_ref[...], axis=1, dtype=jnp.float32) * inv_hw   # (bb, C)
    y = _excite(pooled, w1t_ref[...], w2t_ref[...])                    # (bb, C)
    o_ref[...] = x_ref[...] * y.astype(o_ref.dtype)[:, None, :]


# --------------------------- sizing heuristics ----------------------------- #

def _tpu_vmem_and_cores():
    """Generation-aware VMEM capacity and TensorCore count (conservative fallbacks)."""
    vmem_bytes = 64 << 20          # v7x physical; safe lower bound everywhere
    num_cores = 1
    try:
        info = pltpu.get_tpu_info()
        vmem_bytes = int(getattr(info, "vmem_capacity_bytes", vmem_bytes))
        num_cores = int(getattr(info, "num_cores",
                                getattr(info, "core_count", num_cores)))
    except Exception:
        pass
    try:
        kind = jax.devices()[0].device_kind.lower()
        # v4 / v5p megacore and v7x have 2 TensorCores per chip.
        if ("v4" in kind) or ("v5p" in kind) or ("v7" in kind):
            num_cores = max(num_cores, 2)
    except Exception:
        pass
    return vmem_bytes, max(1, num_cores)


def _pick_block_b(B, per_sample_bytes, block_budget_bytes, num_cores):
    """Largest batch chunk whose double-buffered in+out blocks fit the budget,
    while keeping enough grid steps for pipelining / multi-TC utilization."""
    bb = max(1, min(B, block_budget_bytes // max(1, 4 * per_sample_bytes)))
    # >= 4 grid steps per TensorCore keeps prefetch / writeback DMAs in flight
    # (and feeds both v7x cores), as long as blocks stay >= ~512 KiB so the
    # ~0.35 us per-step overhead is noise.
    min_steps = 4 * num_cores
    min_bb = max(1, -(-(512 * 1024) // max(1, per_sample_bytes)))  # ceil
    bb = min(bb, max(min_bb, pl.cdiv(B, min_steps)))
    bb = max(1, min(bb, B))
    # Prefer a divisor of B (no padded/masked tail block), unless that would
    # shrink the block by more than ~2x.
    if B % bb != 0:
        d = bb
        while d > 1 and B % d != 0:
            d -= 1
        if 2 * d >= bb:
            bb = d
    return bb


# ------------------------------ wrapper ------------------------------------ #

def se_layer(x, w1, w2, *, block_b=None, donate_x=False):
    """x: (B, C, H, W); w1: (C//r, C); w2: (C, C//r)  (PyTorch nn.Linear layout)."""
    B, C, H, W = x.shape
    hid = w1.shape[0]
    HW = H * W
    itemsize = jnp.dtype(x.dtype).itemsize
    per_sample = C * HW * itemsize

    vmem_bytes, num_cores = _tpu_vmem_and_cores()

    # Weights are pre-transposed so the kernel does (bb,C)@(C,hid), (bb,hid)@(hid,C).
    w1t = jnp.asarray(w1.T)                                   # (C, hid)
    w2t = jnp.asarray(w2.T)                                   # (hid, C)
    w_itemsize = jnp.dtype(w1t.dtype).itemsize
    weight_bytes = (w1t.size + w2t.size) * w_itemsize
    weight_vmem = 4 * weight_bytes                            # double-buffered, both

    # Layout: lane (last) axis must be a dense multiple of 128 when possible.
    channels_last = (HW % 128 != 0) and (C % 128 == 0)
    if channels_last:
        x3 = x.reshape(B, C, HW).transpose(0, 2, 1)           # (B, HW, C), lane = C
        kernel = functools.partial(_se_kernel_lane_c, inv_hw=1.0 / HW)
        block_shape = lambda bb: (bb, HW, C)
    else:
        x3 = x.reshape(B, C, HW)                              # (B, C, HW), lane = HW
        kernel = functools.partial(_se_kernel_lane_hw, inv_hw=1.0 / HW)
        block_shape = lambda bb: (bb, C, HW)

    # Generation-aware block budget: ~3/4 of physical VMEM, minus weights/slack.
    vmem_cap = (vmem_bytes * 3) // 4
    block_budget = max(4 * per_sample, vmem_cap - weight_vmem - (2 << 20))
    bb = _pick_block_b(B, per_sample, block_budget, num_cores)
    if block_b is not None:
        bb = max(1, min(B, int(block_b)))
    grid = (pl.cdiv(B, bb),)

    # Explicit VMEM limit that matches the real footprint (with headroom),
    # rather than relying on the default scoped limit (16/32 MiB).
    footprint = 4 * bb * per_sample + weight_vmem
    vmem_limit = footprint + (4 << 20)
    vmem_limit = max(vmem_limit, 24 << 20)                    # don't starve the compiler
    vmem_limit = min(vmem_limit, max(24 << 20, vmem_bytes - (4 << 20)))

    cost = pl.CostEstimate(
        flops=int(2 * B * C * HW + 4 * B * C * hid),
        transcendentals=int(B * C),
        bytes_accessed=int(2 * B * per_sample + 2 * weight_bytes),
    )

    out3 = pl.pallas_call(
        kernel,
        out_shape=jax.ShapeDtypeStruct(x3.shape, x.dtype),
        grid_spec=pltpu.PrefetchScalarGridSpec(
            num_scalar_prefetch=0,
            grid=grid,
            in_specs=[
                pl.BlockSpec(block_shape(bb), lambda b: (b, 0, 0)),
                pl.BlockSpec((C, hid), lambda b: (0, 0)),
                pl.BlockSpec((hid, C), lambda b: (0, 0)),
            ],
            out_specs=pl.BlockSpec(block_shape(bb), lambda b: (b, 0, 0)),
        ),
        compiler_params=pltpu.CompilerParams(
            dimension_semantics=("parallel",),
            vmem_limit_bytes=int(vmem_limit),
        ),
        cost_estimate=cost,
        input_output_aliases=({0: 0} if donate_x else {}),
    )(x3, w1t, w2t)

    if channels_last:
        return out3.transpose(0, 2, 1).reshape(B, C, H, W)
    return out3.reshape(B, C, H, W)


def se_layer_ref(x, w1, w2):
    """Pure-JAX reference matching the PyTorch forward."""
    b, c = x.shape[0], x.shape[1]
    y = jnp.mean(x, axis=(2, 3))                 # (B, C)
    y = jnp.maximum(y @ w1.T, 0.0)               # (B, C//r)
    y = jax.nn.sigmoid(y @ w2.T)                 # (B, C)
    return x * y.reshape(b, c, 1, 1)


if __name__ == "__main__":
    key = jax.random.PRNGKey(0)
    kx, k1, k2 = jax.random.split(key, 3)

    # --- Case 1: H*W = 256 (lane-dense HW layout), reduction=16. ---
    B, C, H, W = 2, 32, 16, 16
    hid = C // 16
    x = jax.random.normal(kx, (B, C, H, W), dtype=jnp.float32)
    w1 = jax.random.normal(k1, (hid, C), dtype=jnp.float32) * 0.1   # (C//r, C)
    w2 = jax.random.normal(k2, (C, hid), dtype=jnp.float32) * 0.1   # (C, C//r)

    out = jax.block_until_ready(se_layer(x, w1, w2))
    ref = se_layer_ref(x, w1, w2)
    assert out.shape == (B, C, H, W)
    assert jnp.allclose(out, ref, atol=1e-5, rtol=1e-5), "mismatch vs reference (case 1)"

    # --- Case 2: H*W = 49 (channels-last lane-dense path) with a batch that
    # does not divide the block, to exercise the masked trailing block. ---
    B2, C2, H2, W2 = 3, 128, 7, 7
    hid2 = C2 // 16
    kx2, k3, k4 = jax.random.split(jax.random.PRNGKey(1), 3)
    x2 = jax.random.normal(kx2, (B2, C2, H2, W2), dtype=jnp.float32)
    w1b = jax.random.normal(k3, (hid2, C2), dtype=jnp.float32) * 0.1
    w2b = jax.random.normal(k4, (C2, hid2), dtype=jnp.float32) * 0.1

    out2 = jax.block_until_ready(se_layer(x2, w1b, w2b, block_b=2))
    ref2 = se_layer_ref(x2, w1b, w2b)
    assert out2.shape == (B2, C2, H2, W2)
    assert jnp.allclose(out2, ref2, atol=1e-5, rtol=1e-5), "mismatch vs reference (case 2)"

    print("KERNEL_OK")
</pallas_src>

<mosaic_0001>
module attributes {stable_mosaic.version = 11 : i64} {
  func.func @_se_kernel_lane_hw(%arg0: i32, %arg1: memref<2x32x256xf32, #tpu.memory_space<vmem>>, %arg2: memref<32x2xf32, #tpu.memory_space<vmem>>, %arg3: memref<2x32xf32, #tpu.memory_space<vmem>>, %arg4: memref<2x32x256xf32, #tpu.memory_space<vmem>>) attributes {dimension_semantics = [#tpu.dimension_semantics<parallel>], iteration_bounds = array<i64: 1>, scalar_prefetch = 0 : i64, scratch_operands = 0 : i64, tpu.core_type = #tpu.core_type<tc>, window_params = [{transform_indices = @transform_0, window_bounds = array<i64: 2, 32, 256>}, {pipeline_mode = #tpu.pipeline_mode<synchronous>, transform_indices = @transform_1, window_bounds = array<i64: 32, 2>}, {pipeline_mode = #tpu.pipeline_mode<synchronous>, transform_indices = @transform_2, window_bounds = array<i64: 2, 32>}, {transform_indices = @transform_3, window_bounds = array<i64: 2, 32, 256>}]} {
    %c0 = arith.constant 0 : index
    %c0_0 = arith.constant 0 : index
    %c0_1 = arith.constant 0 : index
    %0 = vector.load %arg1[%c0, %c0_0, %c0_1] : memref<2x32x256xf32, #tpu.memory_space<vmem>>, vector<2x32x256xf32>
    %cst = arith.constant dense<0.000000e+00> : vector<2x32xf32>
    %1 = vector.multi_reduction <add>, %0, %cst [2] : vector<2x32x256xf32> to vector<2x32xf32>
    %cst_2 = arith.constant 3.906250e-03 : f32
    %2 = vector.broadcast %cst_2 : f32 to vector<2x32xf32>
    %3 = arith.mulf %1, %2 : vector<2x32xf32>
    %c0_3 = arith.constant 0 : index
    %c0_4 = arith.constant 0 : index
    %4 = vector.load %arg2[%c0_3, %c0_4] : memref<32x2xf32, #tpu.memory_space<vmem>>, vector<32x2xf32>
    %c0_5 = arith.constant 0 : index
    %c0_6 = arith.constant 0 : index
    %5 = vector.load %arg3[%c0_5, %c0_6] : memref<2x32xf32, #tpu.memory_space<vmem>>, vector<2x32xf32>
    %cst_7 = arith.constant dense<0.000000e+00> : vector<2x2xf32>
    %6 = tpu.matmul %3, %4, %cst_7 {dimension_numbers = #tpu.dot_dimension_numbers<[1], [0], [0], [1], [0, 0, 1, 1], [], []>} : vector<2x32xf32>, vector<32x2xf32>, vector<2x2xf32> -> vector<2x2xf32>
    %cst_8 = arith.constant 0.000000e+00 : f32
    %7 = vector.broadcast %cst_8 : f32 to vector<2x2xf32>
    %8 = arith.maximumf %6, %7 : vector<2x2xf32>
    %cst_9 = arith.constant dense<0.000000e+00> : vector<2x32xf32>
    %9 = tpu.matmul %8, %5, %cst_9 {dimension_numbers = #tpu.dot_dimension_numbers<[1], [0], [0], [1], [0, 0, 1, 1], [], []>} : vector<2x2xf32>, vector<2x32xf32>, vector<2x32xf32> -> vector<2x32xf32>
    %10 = arith.negf %9 : vector<2x32xf32>
    %11 = math.exp %10 : vector<2x32xf32>
    %cst_10 = arith.constant 1.000000e+00 : f32
    %12 = vector.broadcast %cst_10 : f32 to vector<2x32xf32>
    %13 = arith.addf %12, %11 : vector<2x32xf32>
    %14 = arith.divf %12, %13 : vector<2x32xf32>
    %c0_11 = arith.constant 0 : index
    %c0_12 = arith.constant 0 : index
    %c0_13 = arith.constant 0 : index
    %15 = vector.load %arg1[%c0_11, %c0_12, %c0_13] : memref<2x32x256xf32, #tpu.memory_space<vmem>>, vector<2x32x256xf32>
    %16 = vector.shape_cast %14 : vector<2x32xf32> to vector<2x32x1xf32>
    %17 = vector.broadcast %16 : vector<2x32x1xf32> to vector<2x32x256xf32>
    %18 = arith.mulf %15, %17 : vector<2x32x256xf32>
    %c0_14 = arith.constant 0 : index
    %c0_15 = arith.constant 0 : index
    %c0_16 = arith.constant 0 : index
    %19 = vector.load %arg4[%c0_14, %c0_15, %c0_16] : memref<2x32x256xf32, #tpu.memory_space<vmem>>, vector<2x32x256xf32>
    tpu.vector_store %arg4[%c0_14, %c0_15, %c0_16], %18 {strides = array<i32>} : memref<2x32x256xf32, #tpu.memory_space<vmem>>, vector<2x32x256xf32>,
    return
  }
  func.func @transform_0(%arg0: i32) -> (i32, i32, i32) {
    %c0_i32 = arith.constant 0 : i32
    %c0_i32_0 = arith.constant 0 : i32
    %c0_i32_1 = arith.constant 0 : i32
    return %arg0, %c0_i32, %c0_i32_0 : i32, i32, i32
  }
  func.func @transform_1(%arg0: i32) -> (i32, i32) {
    %c0_i32 = arith.constant 0 : i32
    %c0_i32_0 = arith.constant 0 : i32
    %c0_i32_1 = arith.constant 0 : i32
    return %c0_i32, %c0_i32_0 : i32, i32
  }
  func.func @transform_2(%arg0: i32) -> (i32, i32) {
    %c0_i32 = arith.constant 0 : i32
    %c0_i32_0 = arith.constant 0 : i32
    %c0_i32_1 = arith.constant 0 : i32
    return %c0_i32, %c0_i32_0 : i32, i32
  }
  func.func @transform_3(%arg0: i32) -> (i32, i32, i32) {
    %c0_i32 = arith.constant 0 : i32
    %c0_i32_0 = arith.constant 0 : i32
    %c0_i32_1 = arith.constant 0 : i32
    return %arg0, %c0_i32, %c0_i32_0 : i32, i32, i32
  }
}

</mosaic_0001>

<llo_original>
// kernel: tpu_custom_call.1
$region0: #{tpu_custom_call.1}
  #allocation0 [shape = 'u32[]', space=smem, size = 0x4, offset = 0x4, fixed_abs, tag = 'smem constant byte address 0x4 - core index']
  #allocation1 [shape = 'u32[144,128]{1,0:T(1,128)}', space=vmem, size = 0x12000, scoped, tag = 'internal scratch']
  %s0 = inlined_call_operand.hbm [shape: f32[2,32,256], index: 0, kind: input, shape index: {}]
  %s1 = inlined_call_operand.vmem [shape: f32[32,2], index: 1, kind: input, shape index: {}]
  %s2 = inlined_call_operand.vmem [shape: f32[2,32], index: 2, kind: input, shape index: {}]
  %s3 = inlined_call_operand.hbm [shape: f32[2,32,256], index: 3, kind: output, shape index: {}]
  %s4 = sld [smem:[#allocation0]]
  $region26: #{tpu_custom_call.1} parent=0
    _
  %s6 = ssub.s32 1, %s4
  %s7 = scalar_select 0, %s6, %s4
  $region1: #{tpu_custom_call.1} parent=0
    #allocation2 [shape = 'u8[65536]{0}', space=vmem, size = 0x10000, scoped, tag = 'input window, operand 0, single buffered']
    #allocation3 [shape = 's32[1]{0}', space=sflag, size = 0x4, scoped, tag = 'scoped memory for tpu_custom_call.1']
    #allocation4 [shape = 's32[1]{0}', space=sflag, size = 0x4, scoped, tag = 'scoped memory for tpu_custom_call.1']
    #allocation5 [shape = 'u8[65536]{0}', space=vmem, size = 0x10000, scoped, tag = 'output window, operand 0, single buffered']
    %8 = vsyncpa [#allocation3], 0
    %9 = vsyncpa [#allocation4], 0
    // Predicated region
    $region2: #{tpu_custom_call.1} parent=1 // pred_check
      _
    $region3: #{tpu_custom_call.1} parent=1 // pred_check_branch
      %11 = sbr.rel (0) target = $region5
    $region4: #{tpu_custom_call.1} parent=1 // pred_region
      %s13 = ssub.s32 2048, 2048
      %14 = vsyncadd [#allocation3], %s13
      %s15 = sshll.u32 [#allocation2], 4
      %s16 = int_to_ptr.vmem [resolvable:$true] %s15
      %21 = dma.hbm_to_vmem [thread:$0]  %s0, 2048, %s16, [#allocation3], 256, 256, 16
    $region5: #{tpu_custom_call.1} parent=1 // pred_fallthru
      _
    // Predicated region
    $region6: #{tpu_custom_call.1} parent=1 // pred_check
      _
    $region7: #{tpu_custom_call.1} parent=1 // pred_check_branch
      %23 = sbr.rel (0) target = $region9
    $region8: #{tpu_custom_call.1} parent=1 // pred_region
      _
    $region9: #{tpu_custom_call.1} parent=1 // pred_fallthru
      _
    // Predicated region
    $region10: #{tpu_custom_call.1} parent=1 // pred_check
      _
    $region11: #{tpu_custom_call.1} parent=1 // pred_check_branch
      %25 = sbr.rel (0) target = $region13
    $region12: #{tpu_custom_call.1} parent=1 // pred_region
      _
    $region13: #{tpu_custom_call.1} parent=1 // pred_fallthru
      _
    // Predicated region
    $region14: #{tpu_custom_call.1} parent=1 // pred_check
      _
    $region15: #{tpu_custom_call.1} parent=1 // pred_check_branch
      %27 = sbr.rel (0) target = $region17
    $region16: #{tpu_custom_call.1} parent=1 // pred_region
      %28 = dma.done [#allocation3], 2048
    $region17: #{tpu_custom_call.1} parent=1 // pred_fallthru
      _
    %v29 = vld [vmem:[#allocation2] sm:$0xff]
    %v30 = vld [vmem:[#allocation2 + $0x8] sm:$0xff]
    %v31 = vld [vmem:[#allocation2 + $0x10] sm:$0xff]
    %v32 = vld [vmem:[#allocation2 + $0x18] sm:$0xff]
    %v33 = vld [vmem:[#allocation2 + $0x20] sm:$0xff]
    %v34 = vld [vmem:[#allocation2 + $0x28] sm:$0xff]
    %v35 = vld [vmem:[#allocation2 + $0x30] sm:$0xff]
    %v36 = vld [vmem:[#allocation2 + $0x38] sm:$0xff]
    %v37 = vld [vmem:[#allocation2 + $0x40] sm:$0xff]
    %v38 = vld [vmem:[#allocation2 + $0x48] sm:$0xff]
    %v39 = vld [vmem:[#allocation2 + $0x50] sm:$0xff]
    %v40 = vld [vmem:[#allocation2 + $0x58] sm:$0xff]
    %v41 = vld [vmem:[#allocation2 + $0x60] sm:$0xff]
    %v42 = vld [vmem:[#allocation2 + $0x68] sm:$0xff]
    %v43 = vld [vmem:[#allocation2 + $0x70] sm:$0xff]
    %v44 = vld [vmem:[#allocation2 + $0x78] sm:$0xff]
    %v45 = vadd.f32 %v29, %v30
    %46 = vadd.xlane.f32.xlu0 %v45
    %v47 = vpop.xlane.xlu0 %46
    %v48 = vadd.f32 %v31, %v32
    %49 = vadd.xlane.f32.xlu0 %v48
    %v50 = vpop.xlane.xlu0 %49
    %v51 = vadd.f32 %v33, %v34
    %52 = vadd.xlane.f32.xlu0 %v51
    %v53 = vpop.xlane.xlu0 %52
    %v54 = vadd.f32 %v35, %v36
    %55 = vadd.xlane.f32.xlu0 %v54
    %v56 = vpop.xlane.xlu0 %55
    %v57 = vadd.f32 %v37, %v38
    %58 = vadd.xlane.f32.xlu0 %v57
    %v59 = vpop.xlane.xlu0 %58
    %v60 = vadd.f32 %v39, %v40
    %61 = vadd.xlane.f32.xlu0 %v60
    %v62 = vpop.xlane.xlu0 %61
    %v63 = vadd.f32 %v41, %v42
    %64 = vadd.xlane.f32.xlu0 %v63
    %v65 = vpop.xlane.xlu0 %64
    %v66 = vadd.f32 %v43, %v44
    %67 = vadd.xlane.f32.xlu0 %v66
    %v68 = vpop.xlane.xlu0 %67
    %v69 = vmul.f32 %v47, 0.00390625
    %v70 = vmul.f32 %v50, 0.00390625
    %v71 = vmul.f32 %v53, 0.00390625
    %v72 = vmul.f32 %v56, 0.00390625
    %v73 = vmul.f32 %v59, 0.00390625
    %v74 = vmul.f32 %v62, 0.00390625
    %v75 = vmul.f32 %v65, 0.00390625
    %v76 = vmul.f32 %v68, 0.00390625
    %v77 = vld [vmem:[%s1] sm:$0xff]
    %v78 = vld [vmem:[%s1 + $0x8] sm:$0xff]
    %v79 = vld [vmem:[%s1 + $0x10] sm:$0xff]
    %v80 = vld [vmem:[%s1 + $0x18] sm:$0xff]
    %v81 = vld [vmem:[%s2] sm:$0x3]
    %v90 = vlaneseq
    %v91 = vand.u32 %v90, 127
    %v92 = vlaneseq
    %v93 = vshrl.u32 %v92, 7
    %v94 = vsub.s32 %v91, %v93
    %v95 = vrot.slane %v69, %v94
    %v96 = vadd.s32 %v91, 4294967288
    %v97 = vlaneseq
    %v98 = vshrl.u32 %v97, 7
    %v99 = vsub.s32 %v96, %v98
    %v100 = vrot.slane %v70, %v99
    %vm101 = vcmask 130112
    %v102 = vsel %vm101, %v100, %v95
    %v103 = vadd.s32 %v91, 4294967280
    %v104 = vlaneseq
    %v105 = vshrl.u32 %v104, 7
    %v106 = vsub.s32 %v103, %v105
    %v107 = vrot.slane %v71, %v106
    %vm108 = vcmask 195712
    %v109 = vsel %vm108, %v107, %v102
    %v110 = vadd.s32 %v91, 4294967272
    %v111 = vlaneseq
    %v112 = vshrl.u32 %v111, 7
    %v113 = vsub.s32 %v110, %v112
    %v114 = vrot.slane %v72, %v113
    %vm115 = vcmask 261312
    %v116 = vsel %vm115, %v114, %v109
    %v117 = vlaneseq
    %v118 = vshrl.u32 %v117, 7
    %v119 = vsub.s32 %v91, %v118
    %v120 = vrot.slane %v73, %v119
    %v121 = vlaneseq
    %v122 = vshrl.u32 %v121, 7
    %v123 = vsub.s32 %v96, %v122
    %v124 = vrot.slane %v74, %v123
    %v125 = vsel %vm101, %v124, %v120
    %v126 = vlaneseq
    %v127 = vshrl.u32 %v126, 7
    %v128 = vsub.s32 %v103, %v127
    %v129 = vrot.slane %v75, %v128
    %v130 = vsel %vm108, %v129, %v125
    %v131 = vlaneseq
    %v132 = vshrl.u32 %v131, 7
    %v133 = vsub.s32 %v110, %v132
    %v134 = vrot.slane %v76, %v133
    %v135 = vsel %vm115, %v134, %v130
    %vm136 = vcmask 1041409
    %v137 = vsel %vm136, %v135, %v116
    %vm138 = vcmask 261120
    %v139 = vsel %vm138, %v137, 0
    %141 = vmatprep.subr.mxu0 0.0
    %142 = vmatpush1.msra.mxu0 %v77
    %143 = vmatprep.subr.mxu0 0.0
    %144 = vmatpush1.msra.mxu0 %v78
    %145 = vmatprep.subr.mxu0 0.0
    %146 = vmatpush1.msra.mxu0 %v79
    %147 = vmatprep.subr.mxu0 0.0
    %148 = vmatpush1.msra.mxu0 %v80
    %149 = vmatprep.subr.mxu0 0.0
    %150 = vmatpush1.msra.mxu0 0.0
    %151 = vmatprep.subr.mxu0 0.0
    %152 = vmatpush1.msra.mxu0 0.0
    %153 = vmatprep.subr.mxu0 0.0
    %154 = vmatpush1.msra.mxu0 0.0
    %155 = vmatprep.subr.mxu0 0.0
    %156 = vmatpush1.msra.mxu0 0.0
    %157 = vmatprep.subr.mxu0 0.0
    %158 = vmatpush1.msra.mxu0 0.0
    %159 = vmatprep.subr.mxu0 0.0
    %160 = vmatpush1.msra.mxu0 0.0
    %161 = vmatprep.subr.mxu0 0.0
    %162 = vmatpush1.msra.mxu0 0.0
    %163 = vmatprep.subr.mxu0 0.0
    %164 = vmatpush1.msra.mxu0 0.0
    %165 = vmatprep.subr.mxu0 0.0
    %166 = vmatpush1.msra.mxu0 0.0
    %167 = vmatprep.subr.mxu0 0.0
    %168 = vmatpush1.msra.mxu0 0.0
    %169 = vmatprep.subr.mxu0 0.0
    %170 = vmatpush1.msra.mxu0 0.0
    %171 = vmatprep.subr.mxu0 0.0
    %172 = vmatpush1.msra.mxu0 0.0
    %173 = vmatprep.subr.mxu0 0.0
    %174 = vmatpush1.msra.mxu0 0.0
    %175 = vmatprep.subr.mxu0 0.0
    %176 = vmatpush1.msra.mxu0 0.0
    %177 = vmatprep.subr.mxu0 0.0
    %178 = vmatpush1.msra.mxu0 0.0
    %179 = vmatprep.subr.mxu0 0.0
    %180 = vmatpush1.msra.mxu0 0.0
    %181 = vmatprep.subr.mxu0 0.0
    %182 = vmatpush1.msra.mxu0 0.0
    %183 = vmatprep.subr.mxu0 0.0
    %184 = vmatpush1.msra.mxu0 0.0
    %185 = vmatprep.subr.mxu0 0.0
    %186 = vmatpush1.msra.mxu0 0.0
    %187 = vmatprep.subr.mxu0 0.0
    %188 = vmatpush1.msra.mxu0 0.0
    %189 = vmatprep.subr.mxu0 0.0
    %190 = vmatpush1.msra.mxu0 0.0
    %191 = vmatprep.subr.mxu0 0.0
    %192 = vmatpush1.msra.mxu0 0.0
    %193 = vmatprep.subr.mxu0 0.0
    %194 = vmatpush1.msra.mxu0 0.0
    %195 = vmatprep.subr.mxu0 0.0
    %196 = vmatpush1.msra.mxu0 0.0
    %197 = vmatprep.subr.mxu0 0.0
    %198 = vmatpush1.msra.mxu0 0.0
    %199 = vmatprep.subr.mxu0 0.0
    %200 = vmatpush1.msra.mxu0 0.0
    %201 = vmatprep.subr.mxu0 0.0
    %202 = vmatpush1.msra.mxu0 0.0
    %203 = vmatprep.subr.mxu0 0.0
    %204 = vmatpush1.msra.mxu0 0.0
    %205 = vmatprep.mubr.f32.mxu0 0.0
    %206 = vmatmul.mubr.f32.gmra.mrb[0].mxu0 %v139
    %v207 = vpop.f32.mrb[0].mxu0
    %v208 = vadd.f32 0.0, %v207
    %v209 = vpop.f32.mrb[0].mxu0
    %210 = vdwg.mxu0
    %v211 = vmax.f32 %v208, 0.0
    %vm212 = vcmask 15360
    %v214 = vsel %vm212, %v211, 0
    %vm216 = vcmask 1041408
    %v218 = vsel %vm216, %v81, 0
    %220 = vmatprep.subr.mxu0 0.0
    %221 = vmatpush1.msra.mxu0 %v218
    %222 = vmatprep.subr.mxu0 0.0
    %223 = vmatpush1.msra.mxu0 0.0
    %224 = vmatprep.subr.mxu0 0.0
    %225 = vmatpush1.msra.mxu0 0.0
    %226 = vmatprep.subr.mxu0 0.0
    %227 = vmatpush1.msra.mxu0 0.0
    %228 = vmatprep.subr.mxu0 0.0
    %229 = vmatpush1.msra.mxu0 0.0
    %230 = vmatprep.subr.mxu0 0.0
    %231 = vmatpush1.msra.mxu0 0.0
    %232 = vmatprep.subr.mxu0 0.0
    %233 = vmatpush1.msra.mxu0 0.0
    %234 = vmatprep.subr.mxu0 0.0
    %235 = vmatpush1.msra.mxu0 0.0
    %236 = vmatprep.subr.mxu0 0.0
    %237 = vmatpush1.msra.mxu0 0.0
    %238 = vmatprep.subr.mxu0 0.0
    %239 = vmatpush1.msra.mxu0 0.0
    %240 = vmatprep.subr.mxu0 0.0
    %241 = vmatpush1.msra.mxu0 0.0
    %242 = vmatprep.subr.mxu0 0.0
    %243 = vmatpush1.msra.mxu0 0.0
    %244 = vmatprep.subr.mxu0 0.0
    %245 = vmatpush1.msra.mxu0 0.0
    %246 = vmatprep.subr.mxu0 0.0
    %247 = vmatpush1.msra.mxu0 0.0
    %248 = vmatprep.subr.mxu0 0.0
    %249 = vmatpush1.msra.mxu0 0.0
    %250 = vmatprep.subr.mxu0 0.0
    %251 = vmatpush1.msra.mxu0 0.0
    %252 = vmatprep.subr.mxu0 0.0
    %253 = vmatpush1.msra.mxu0 0.0
    %254 = vmatprep.subr.mxu0 0.0
    %255 = vmatpush1.msra.mxu0 0.0
    %256 = vmatprep.subr.mxu0 0.0
    %257 = vmatpush1.msra.mxu0 0.0
    %258 = vmatprep.subr.mxu0 0.0
    %259 = vmatpush1.msra.mxu0 0.0
    %260 = vmatprep.subr.mxu0 0.0
    %261 = vmatpush1.msra.mxu0 0.0
    %262 = vmatprep.subr.mxu0 0.0
    %263 = vmatpush1.msra.mxu0 0.0
    %264 = vmatprep.subr.mxu0 0.0
    %265 = vmatpush1.msra.mxu0 0.0
    %266 = vmatprep.subr.mxu0 0.0
    %267 = vmatpush1.msra.mxu0 0.0
    %268 = vmatprep.subr.mxu0 0.0
    %269 = vmatpush1.msra.mxu0 0.0
    %270 = vmatprep.subr.mxu0 0.0
    %271 = vmatpush1.msra.mxu0 0.0
    %272 = vmatprep.subr.mxu0 0.0
    %273 = vmatpush1.msra.mxu0 0.0
    %274 = vmatprep.subr.mxu0 0.0
    %275 = vmatpush1.msra.mxu0 0.0
    %276 = vmatprep.subr.mxu0 0.0
    %277 = vmatpush1.msra.mxu0 0.0
    %278 = vmatprep.subr.mxu0 0.0
    %279 = vmatpush1.msra.mxu0 0.0
    %280 = vmatprep.subr.mxu0 0.0
    %281 = vmatpush1.msra.mxu0 0.0
    %282 = vmatprep.subr.mxu0 0.0
    %283 = vmatpush1.msra.mxu0 0.0
    %284 = vmatprep.mubr.f32.mxu0 0.0
    %285 = vmatmul.mubr.f32.gmra.mrb[0].mxu0 %v214
    %v286 = vpop.f32.mrb[0].mxu0
    %v287 = vadd.f32 0.0, %v286
    %v288 = vpop.f32.mrb[0].mxu0
    %289 = vdwg.mxu0
    %v290 = vxor.u32 %v287, 2147483648
    %v291 = vmul.f32 %v290, 1.442695
    %v292 = vpow.pop %v291
    %v293 = vadd.f32 %v292, 1.0
    %v294 = vrcp.pop %v293
    %v295 = vmul.f32 1.0, %v294
    %v296 = vlaneseq
    %v297 = vshrl.u32 %v296, 7
    %v298 = vsub.s32 0, %v297
    %v299 = vrot.slane %v295, %v298
    %301 = vbcast.lane.b32.xlu0 %v299, 256
    %v302 = vpop.permute.xlu0 %301
    %s304 = sor.u32 256, 8
    %305 = vbcast.lane.b32.xlu0 %v299, %s304
    %v306 = vpop.permute.xlu0 %305
    %s308 = sor.u32 256, 16
    %309 = vbcast.lane.b32.xlu0 %v299, %s308
    %v310 = vpop.permute.xlu0 %309
    %s312 = sor.u32 256, 24
    %313 = vbcast.lane.b32.xlu0 %v299, %s312
    %v314 = vpop.permute.xlu0 %313
    %v315 = vlaneseq
    %v316 = vshrl.u32 %v315, 7
    %v317 = vsub.s32 1, %v316
    %v318 = vrot.slane %v295, %v317
    %320 = vbcast.lane.b32.xlu0 %v318, 256
    %v321 = vpop.permute.xlu0 %320
    %s323 = sor.u32 256, 8
    %324 = vbcast.lane.b32.xlu0 %v318, %s323
    %v325 = vpop.permute.xlu0 %324
    %s327 = sor.u32 256, 16
    %328 = vbcast.lane.b32.xlu0 %v318, %s327
    %v329 = vpop.permute.xlu0 %328
    %s331 = sor.u32 256, 24
    %332 = vbcast.lane.b32.xlu0 %v318, %s331
    %v333 = vpop.permute.xlu0 %332
    %v334 = vmul.f32 %v29, %v302
    %v335 = vmul.f32 %v30, %v302
    %v336 = vmul.f32 %v31, %v306
    %v337 = vmul.f32 %v32, %v306
    %v338 = vmul.f32 %v33, %v310
    %v339 = vmul.f32 %v34, %v310
    %v340 = vmul.f32 %v35, %v314
    %v341 = vmul.f32 %v36, %v314
    %v342 = vmul.f32 %v37, %v321
    %v343 = vmul.f32 %v38, %v321
    %v344 = vmul.f32 %v39, %v325
    %v345 = vmul.f32 %v40, %v325
    %v346 = vmul.f32 %v41, %v329
    %v347 = vmul.f32 %v42, %v329
    %v348 = vmul.f32 %v43, %v333
    %v349 = vmul.f32 %v44, %v333
    %350 = vst [vmem:[#allocation5] sm:$0xff] %v334
    %351 = vst [vmem:[#allocation5 + $0x8] sm:$0xff] %v335
    %352 = vst [vmem:[#allocation5 + $0x10] sm:$0xff] %v336
    %353 = vst [vmem:[#allocation5 + $0x18] sm:$0xff] %v337
    %354 = vst [vmem:[#allocation5 + $0x20] sm:$0xff] %v338
    %355 = vst [vmem:[#allocation5 + $0x28] sm:$0xff] %v339
    %356 = vst [vmem:[#allocation5 + $0x30] sm:$0xff] %v340
    %357 = vst [vmem:[#allocation5 + $0x38] sm:$0xff] %v341
    %358 = vst [vmem:[#allocation5 + $0x40] sm:$0xff] %v342
    %359 = vst [vmem:[#allocation5 + $0x48] sm:$0xff] %v343
    %360 = vst [vmem:[#allocation5 + $0x50] sm:$0xff] %v344
    %361 = vst [vmem:[#allocation5 + $0x58] sm:$0xff] %v345
    %362 = vst [vmem:[#allocation5 + $0x60] sm:$0xff] %v346
    %363 = vst [vmem:[#allocation5 + $0x68] sm:$0xff] %v347
    %364 = vst [vmem:[#allocation5 + $0x70] sm:$0xff] %v348
    %365 = vst [vmem:[#allocation5 + $0x78] sm:$0xff] %v349
    // Predicated region
    $region18: #{tpu_custom_call.1} parent=1 // pred_check
      _
    $region19: #{tpu_custom_call.1} parent=1 // pred_check_branch
      %367 = sbr.rel (0) target = $region21
    $region20: #{tpu_custom_call.1} parent=1 // pred_region
      %s369 = ssub.s32 2048, 2048
      %370 = vsyncadd [#allocation4], %s369
      %s371 = sshll.u32 [#allocation5], 4
      %s372 = int_to_ptr.vmem [resolvable:$true] %s371
      %377 = dma.vmem_to_hbm [thread:$0]  %s372, 2048, %s3, [#allocation4], 256, 256, 16
    $region21: #{tpu_custom_call.1} parent=1 // pred_fallthru
      _
    // Predicated region
    $region22: #{tpu_custom_call.1} parent=1 // pred_check
      _
    $region23: #{tpu_custom_call.1} parent=1 // pred_check_branch
      %379 = sbr.rel (0) target = $region25
    $region24: #{tpu_custom_call.1} parent=1 // pred_region
      %380 = dma.done [#allocation4], 2048
    $region25: #{tpu_custom_call.1} parent=1 // pred_fallthru
      _
    %381 = vsyncpa [#allocation3], 1
    %382 = vsyncpa [#allocation4], 1

</llo_original>
